<compile_context>
chip_gen: v7x
topology: tpu7x:2x2x1
jax: 0.10.0
libtpu: 0.0.40
codegen_flags: <defaults>
</compile_context>

<pallas_src>
import functools

import jax
import jax.numpy as jnp
from jax.experimental import pallas as pl
from jax.experimental.pallas import tpu as pltpu


def _embeddings_kernel(
    ids_ref,                 # (Mp,) int32 in SMEM (scalar prefetch): word ids
    word_tab_hbm,            # (V, H) word-embedding table, stays in HBM
    pos_tab_ref,             # (Pp, H) position table, resident in VMEM
    tt_tab_ref,              # (Tt, H) token-type table, resident in VMEM
    gamma_ref, beta_ref,     # (1, H) LayerNorm affine params
    pos_ids_ref,             # (tm, 1) int32 block of position ids
    tt_ids_ref,              # (tm, 1) int32 block of token-type ids
    o_ref,                   # (tm, H) output tile
    word_buf,                # (2, tm, H) gathered word rows (double buffered)
    dma_sem,                 # (2,) DMA semaphores, one per slot
    *, eps: float, tm: int, chunk_len: int, tt_is_zero: bool, unroll: int):
  i = pl.program_id(1)                          # step within this chunk
  tile = pl.program_id(0) * chunk_len + i       # global token-tile index
  slot = jax.lax.rem(tile, 2)

  def issue(t, s):
    # One (1, H) row DMA per token of tile t, all signalling dma_sem[s].
    base = t * tm
    @pl.loop(0, tm // unroll)
    def _(c):
      r0 = c * unroll
      for u in range(unroll):                   # static unroll: co-issue id
        r = r0 + u                              # loads + descriptor pushes
        tok = ids_ref[base + r]
        pltpu.make_async_copy(
            word_tab_hbm.at[pl.ds(tok, 1), :],
            word_buf.at[s, pl.ds(r, 1), :],
            dma_sem.at[s],
        ).start()

  # Prime: the first step of each chunk gathers its own tile's word rows.
  @pl.when(i == 0)
  def _():
    issue(tile, slot)

  # Cross-step double buffering: prefetch the NEXT tile's word rows into the
  # other slot so the HBM gather overlaps this step's compute.
  if chunk_len > 1:
    @pl.when(i + 1 < chunk_len)
    def _():
      issue(tile + 1, 1 - slot)

  # Position (+ token-type) embeddings via one-hot matmuls on the idle MXU.
  pp = pos_tab_ref.shape[0]
  pos_oh = (jax.lax.broadcasted_iota(jnp.int32, (tm, pp), 1)
            == pos_ids_ref[...]).astype(pos_tab_ref.dtype)
  add = jnp.dot(pos_oh, pos_tab_ref[...], preferred_element_type=jnp.float32)
  if tt_is_zero:
    # Default HF path: token_type_ids is all zeros -> broadcast-add row 0.
    add = add + tt_tab_ref[0:1, :].astype(jnp.float32)
  else:
    tt = tt_tab_ref.shape[0]
    tt_oh = (jax.lax.broadcasted_iota(jnp.int32, (tm, tt), 1)
             == tt_ids_ref[...]).astype(tt_tab_ref.dtype)
    add = add + jnp.dot(tt_oh, tt_tab_ref[...],
                        preferred_element_type=jnp.float32)

  # Single aggregate wait for this tile's gather: every row copy is (1, H) of
  # the same dtype on dma_sem[slot], so one (tm, H) descriptor matches the
  # total byte count signalled.
  pltpu.make_async_copy(
      word_buf.at[slot], word_buf.at[slot], dma_sem.at[slot]).wait()

  # Sum the embeddings and LayerNorm over the hidden dim (f32 math).
  x = word_buf[slot].astype(jnp.float32) + add
  mu = jnp.mean(x, axis=-1, keepdims=True)
  var = jnp.mean(jnp.square(x - mu), axis=-1, keepdims=True)
  xn = (x - mu) * jax.lax.rsqrt(var + eps)
  xn = xn * gamma_ref[...].astype(jnp.float32) + beta_ref[...].astype(jnp.float32)
  # TODO(synk): dropout is identity in eval mode; training-mode dropout
  # (pltpu.prng_seed + random mask) not implemented.
  o_ref[...] = xn.astype(o_ref.dtype)


def roberta_prelayernorm_embeddings(
    input_ids, word_emb, pos_emb, tt_emb, gamma, beta, *,
    padding_idx, eps=1e-12, token_type_ids=None, position_ids=None,
    past_key_values_length=0, tile_m=256):
  """input_ids: (B, S) int; tables: (V,H), (P,H), (T,H); returns (B, S, H)."""
  # TODO(synk): the inputs_embeds path of the PyTorch module is not implemented
  # (only the input_ids path).
  B, S = input_ids.shape
  V, H = word_emb.shape
  P = pos_emb.shape[0]
  T = tt_emb.shape[0]

  ids = input_ids.astype(jnp.int32)

  # create_position_ids_from_input_ids (cheap per-token integer cumsum; done
  # in the wrapper — a scalar sequence scan has no tile-level Pallas benefit).
  if position_ids is None:
    mask = (ids != padding_idx).astype(jnp.int32)
    position_ids = (jnp.cumsum(mask, axis=1)
                    + past_key_values_length) * mask + padding_idx
  position_ids = position_ids.astype(jnp.int32)

  tt_is_zero = token_type_ids is None
  if tt_is_zero:
    token_type_ids = jnp.zeros((B, S), dtype=jnp.int32)
  token_type_ids = token_type_ids.astype(jnp.int32)

  # Token tiling: bounded tile tm (multiple of 8).  2-D grid:
  #   outer axis ("parallel", megacore-splittable) x inner axis ("arbitrary",
  #   sequential -> cross-step double buffering of the word-row gather).
  M = B * S
  tm = max(8, min(int(tile_m), max(M, 8)))
  tm = (tm + 7) // 8 * 8
  num_tiles = -(-M // tm)
  num_chunks = 2 if num_tiles >= 2 else 1
  chunk_len = -(-num_tiles // num_chunks)
  Mp = num_chunks * chunk_len * tm

  ids_flat = jnp.pad(ids.reshape(M), (0, Mp - M), constant_values=padding_idx)
  pos_flat = jnp.pad(position_ids.reshape(M), (0, Mp - M),
                     constant_values=padding_idx)
  tt_flat = jnp.pad(token_type_ids.reshape(M), (0, Mp - M), constant_values=0)
  pos_ids2d = pos_flat.reshape(Mp, 1)
  tt_ids2d = tt_flat.reshape(Mp, 1)

  # Pad the position table so the one-hot contraction dim is lane-dense
  # (multiple of 128).  Padded rows are never selected by valid position ids.
  Pp = -(-P // 128) * 128
  pos_pad = jnp.pad(pos_emb, ((0, Pp - P), (0, 0)))
  if tt_is_zero:
    tt_tab = tt_emb                       # only row 0 is used (broadcast add)
  else:
    Tt = -(-T // 128) * 128
    tt_tab = jnp.pad(tt_emb, ((0, Tt - T), (0, 0)))

  gamma2 = gamma.reshape(1, H)
  beta2 = beta.reshape(1, H)

  unroll = 8
  kernel = functools.partial(
      _embeddings_kernel, eps=float(eps), tm=tm, chunk_len=chunk_len,
      tt_is_zero=tt_is_zero, unroll=unroll)

  def tok_map(o, i, ids):
    return (o * chunk_len + i, 0)

  def const_map(o, i, ids):
    return (0, 0)

  itemsize = jnp.dtype(word_emb.dtype).itemsize
  vmem_est = (2 * tm * H * itemsize                 # double-buffered word rows
              + 2 * tm * H * itemsize               # pipelined output tiles
              + 2 * (Pp + tt_tab.shape[0]) * H * itemsize   # resident tables
              + 4 * tm * max(Pp, H) * 4             # one-hot / f32 temporaries
              + (4 << 20))                          # slack
  vmem_limit = int(min(max(vmem_est, 32 * 1024 * 1024), 60 * 1024 * 1024))

  out2d = pl.pallas_call(
      kernel,
      out_shape=jax.ShapeDtypeStruct((Mp, H), word_emb.dtype),
      grid_spec=pltpu.PrefetchScalarGridSpec(
          num_scalar_prefetch=1,
          grid=(num_chunks, chunk_len),
          in_specs=[
              pl.BlockSpec(memory_space=pl.ANY),              # word table (HBM)
              pl.BlockSpec((Pp, H), const_map),               # pos table (VMEM)
              pl.BlockSpec((tt_tab.shape[0], H), const_map),  # token-type table
              pl.BlockSpec((1, H), const_map),                # LN gamma
              pl.BlockSpec((1, H), const_map),                # LN beta
              pl.BlockSpec((tm, 1), tok_map),                 # position ids
              pl.BlockSpec((tm, 1), tok_map),                 # token-type ids
          ],
          out_specs=pl.BlockSpec((tm, H), tok_map),
          scratch_shapes=[
              pltpu.VMEM((2, tm, H), word_emb.dtype),   # gathered word rows
              pltpu.SemaphoreType.DMA((2,)),            # one sem per slot
          ]),
      compiler_params=pltpu.CompilerParams(
          dimension_semantics=("parallel", "arbitrary"),
          vmem_limit_bytes=vmem_limit),
  )(ids_flat, word_emb, pos_pad, tt_tab, gamma2, beta2, pos_ids2d, tt_ids2d)

  return out2d[:M].reshape(B, S, H)


def _reference(input_ids, word_emb, pos_emb, tt_emb, gamma, beta, *,
               padding_idx, eps, token_type_ids=None, past_key_values_length=0):
  mask = (input_ids != padding_idx).astype(jnp.int32)
  position_ids = (jnp.cumsum(mask, axis=1)
                  + past_key_values_length) * mask + padding_idx
  if token_type_ids is None:
    token_type_ids = jnp.zeros_like(input_ids)
  e = word_emb[input_ids] + tt_emb[token_type_ids] + pos_emb[position_ids]
  x = e.astype(jnp.float32)
  mu = jnp.mean(x, axis=-1, keepdims=True)
  var = jnp.mean(jnp.square(x - mu), axis=-1, keepdims=True)
  xn = (x - mu) * jax.lax.rsqrt(var + eps) * gamma + beta
  return xn.astype(word_emb.dtype)


if __name__ == "__main__":
  # Small config: vocab=96, max_pos=64, type_vocab=2, hidden=128
  B, S, H = 2, 8, 128
  V, P, T = 96, 64, 2
  pad_id = 1
  eps = 1e-12

  key = jax.random.PRNGKey(0)
  k_ids, k_w, k_p, k_t, k_g, k_b, k_id2, k_tt = jax.random.split(key, 8)

  input_ids = jax.random.randint(k_ids, (B, S), 0, V, dtype=jnp.int32)
  input_ids = input_ids.at[1, -2:].set(pad_id)     # exercise the padding mask

  word_emb = jax.random.normal(k_w, (V, H), dtype=jnp.float32) * 0.02
  pos_emb = jax.random.normal(k_p, (P, H), dtype=jnp.float32) * 0.02
  tt_emb = jax.random.normal(k_t, (T, H), dtype=jnp.float32) * 0.02
  gamma = 1.0 + 0.1 * jax.random.normal(k_g, (H,), dtype=jnp.float32)
  beta = 0.1 * jax.random.normal(k_b, (H,), dtype=jnp.float32)

  # Test 1: default HF path (token_type_ids=None), single-tile grid.
  out1 = roberta_prelayernorm_embeddings(
      input_ids, word_emb, pos_emb, tt_emb, gamma, beta,
      padding_idx=pad_id, eps=eps)
  out1 = jax.block_until_ready(out1)
  ref1 = _reference(input_ids, word_emb, pos_emb, tt_emb, gamma, beta,
                    padding_idx=pad_id, eps=eps)
  assert out1.shape == (B, S, H), out1.shape
  assert jnp.allclose(out1, ref1, atol=1e-5, rtol=1e-5), float(
      jnp.max(jnp.abs(out1 - ref1)))

  # Test 2: explicit token_type_ids + multi-tile grid (tm=8 -> grid (2, 2)):
  # exercises priming, the cross-step double-buffered gather, and both chunks.
  B2, S2 = 2, 16
  input_ids2 = jax.random.randint(k_id2, (B2, S2), 0, V, dtype=jnp.int32)
  input_ids2 = input_ids2.at[0, -3:].set(pad_id)
  tt_ids2 = jax.random.randint(k_tt, (B2, S2), 0, T, dtype=jnp.int32)
  out2 = roberta_prelayernorm_embeddings(
      input_ids2, word_emb, pos_emb, tt_emb, gamma, beta,
      padding_idx=pad_id, eps=eps, token_type_ids=tt_ids2, tile_m=8)
  out2 = jax.block_until_ready(out2)
  ref2 = _reference(input_ids2, word_emb, pos_emb, tt_emb, gamma, beta,
                    padding_idx=pad_id, eps=eps, token_type_ids=tt_ids2)
  assert out2.shape == (B2, S2, H), out2.shape
  assert jnp.allclose(out2, ref2, atol=1e-5, rtol=1e-5), float(
      jnp.max(jnp.abs(out2 - ref2)))

  print("KERNEL_OK")
</pallas_src>

<mosaic_0001>
module attributes {stable_mosaic.version = 11 : i64} {
  func.func @_embeddings_kernel(%arg0: i32, %arg1: i32, %arg2: memref<16xi32, #tpu.memory_space<smem>>, %arg3: memref<96x128xf32, #tpu.memory_space<any>>, %arg4: memref<128x128xf32, #tpu.memory_space<vmem>>, %arg5: memref<2x128xf32, #tpu.memory_space<vmem>>, %arg6: memref<1x128xf32, #tpu.memory_space<vmem>>, %arg7: memref<1x128xf32, #tpu.memory_space<vmem>>, %arg8: memref<16x1xi32, #tpu.memory_space<vmem>>, %arg9: memref<16x1xi32, #tpu.memory_space<vmem>>, %arg10: memref<16x128xf32, #tpu.memory_space<vmem>>, %arg11: memref<2x16x128xf32, #tpu.memory_space<vmem>>, %arg12: memref<2x!tpu.dma_semaphore, #tpu.memory_space<semaphore_mem>>) attributes {dimension_semantics = [#tpu.dimension_semantics<parallel>, #tpu.dimension_semantics<arbitrary>], iteration_bounds = array<i64: 1, 1>, scalar_prefetch = 1 : i64, scratch_operands = 2 : i64, tpu.core_type = #tpu.core_type<tc>, window_params = [{}, {pipeline_mode = #tpu.pipeline_mode<synchronous>, transform_indices = @transform_1, window_bounds = array<i64: 128, 128>}, {pipeline_mode = #tpu.pipeline_mode<synchronous>, transform_indices = @transform_2, window_bounds = array<i64: 2, 128>}, {pipeline_mode = #tpu.pipeline_mode<synchronous>, transform_indices = @transform_3, window_bounds = array<i64: 1, 128>}, {pipeline_mode = #tpu.pipeline_mode<synchronous>, transform_indices = @transform_4, window_bounds = array<i64: 1, 128>}, {transform_indices = @transform_5, window_bounds = array<i64: 16, 1>}, {transform_indices = @transform_6, window_bounds = array<i64: 16, 1>}, {transform_indices = @transform_7, window_bounds = array<i64: 16, 128>}]} {
    %c1_i32 = arith.constant 1 : i32
    %0 = arith.muli %arg0, %c1_i32 : i32
    %1 = arith.addi %0, %arg1 : i32
    %c2_i32 = arith.constant 2 : i32
    %2 = arith.remsi %1, %c2_i32 : i32
    %c0_i32 = arith.constant 0 : i32
    %3 = arith.cmpi eq, %arg1, %c0_i32 : i32
    %4 = arith.extui %3 : i1 to i32
    %c0_i32_0 = arith.constant 0 : i32
    %5 = arith.cmpi ne, %4, %c0_i32_0 : i32
    scf.if %5 {
      %c16_i32 = arith.constant 16 : i32
      %52 = arith.muli %1, %c16_i32 : i32
      %c0_i32_23 = arith.constant 0 : i32
      %c2_i32_24 = arith.constant 2 : i32
      %53 = arith.addi %c0_i32_23, %c2_i32_24 : i32
      %c1_i32_25 = arith.constant 1 : i32
      scf.for %arg13 = %c0_i32_23 to %53 step %c1_i32_25  : i32 {
        %c1_i32_27 = arith.constant 1 : i32
        %54 = arith.muli %arg13, %c1_i32_27 : i32
        %c0_i32_28 = arith.constant 0 : i32
        %55 = arith.addi %c0_i32_28, %54 : i32
        %c8_i32 = arith.constant 8 : i32
        %56 = arith.muli %55, %c8_i32 : i32
        %c0_i32_29 = arith.constant 0 : i32
        %57 = arith.addi %56, %c0_i32_29 : i32
        %58 = arith.addi %52, %57 : i32
        %59 = arith.index_cast %58 : i32 to index
        %60 = memref.load %arg2[%59] : memref<16xi32, #tpu.memory_space<smem>>
        %c0_i32_30 = arith.constant 0 : i32
        %61 = tpu.memref_slice %arg3[%60, %c0_i32_30] : memref<96x128xf32, #tpu.memory_space<any>> -> memref<1x128xf32, #tpu.memory_space<any>>
        %c0_i32_31 = arith.constant 0 : i32
        %62 = tpu.memref_slice %arg11[%2, %57, %c0_i32_31] : memref<2x16x128xf32, #tpu.memory_space<vmem>> -> memref<1x1x128xf32, #tpu.memory_space<vmem>>
        %63 = tpu.memref_squeeze %62 : memref<1x1x128xf32, #tpu.memory_space<vmem>> -> memref<1x128xf32, #tpu.memory_space<vmem>>
        %64 = tpu.memref_slice %arg12[%2] : memref<2x!tpu.dma_semaphore, #tpu.memory_space<semaphore_mem>> -> memref<1x!tpu.dma_semaphore, #tpu.memory_space<semaphore_mem>>
        %65 = tpu.memref_squeeze %64 : memref<1x!tpu.dma_semaphore, #tpu.memory_space<semaphore_mem>> -> memref<!tpu.dma_semaphore, #tpu.memory_space<semaphore_mem>>
        tpu.enqueue_dma source(%61 : memref<1x128xf32, #tpu.memory_space<any>>) target(%63 : memref<1x128xf32, #tpu.memory_space<vmem>>) target_semaphore(%65 : memref<!tpu.dma_semaphore, #tpu.memory_space<semaphore_mem>>)
        %c1_i32_32 = arith.constant 1 : i32
        %66 = arith.addi %56, %c1_i32_32 : i32
        %67 = arith.addi %52, %66 : i32
        %68 = arith.index_cast %67 : i32 to index
        %69 = memref.load %arg2[%68] : memref<16xi32, #tpu.memory_space<smem>>
        %c0_i32_33 = arith.constant 0 : i32
        %70 = tpu.memref_slice %arg3[%69, %c0_i32_33] : memref<96x128xf32, #tpu.memory_space<any>> -> memref<1x128xf32, #tpu.memory_space<any>>
        %c0_i32_34 = arith.constant 0 : i32
        %71 = tpu.memref_slice %arg11[%2, %66, %c0_i32_34] : memref<2x16x128xf32, #tpu.memory_space<vmem>> -> memref<1x1x128xf32, #tpu.memory_space<vmem>>
        %72 = tpu.memref_squeeze %71 : memref<1x1x128xf32, #tpu.memory_space<vmem>> -> memref<1x128xf32, #tpu.memory_space<vmem>>
        %73 = tpu.memref_slice %arg12[%2] : memref<2x!tpu.dma_semaphore, #tpu.memory_space<semaphore_mem>> -> memref<1x!tpu.dma_semaphore, #tpu.memory_space<semaphore_mem>>
        %74 = tpu.memref_squeeze %73 : memref<1x!tpu.dma_semaphore, #tpu.memory_space<semaphore_mem>> -> memref<!tpu.dma_semaphore, #tpu.memory_space<semaphore_mem>>
        tpu.enqueue_dma source(%70 : memref<1x128xf32, #tpu.memory_space<any>>) target(%72 : memref<1x128xf32, #tpu.memory_space<vmem>>) target_semaphore(%74 : memref<!tpu.dma_semaphore, #tpu.memory_space<semaphore_mem>>)
        %c2_i32_35 = arith.constant 2 : i32
        %75 = arith.addi %56, %c2_i32_35 : i32
        %76 = arith.addi %52, %75 : i32
        %77 = arith.index_cast %76 : i32 to index
        %78 = memref.load %arg2[%77] : memref<16xi32, #tpu.memory_space<smem>>
        %c0_i32_36 = arith.constant 0 : i32
        %79 = tpu.memref_slice %arg3[%78, %c0_i32_36] : memref<96x128xf32, #tpu.memory_space<any>> -> memref<1x128xf32, #tpu.memory_space<any>>
        %c0_i32_37 = arith.constant 0 : i32
        %80 = tpu.memref_slice %arg11[%2, %75, %c0_i32_37] : memref<2x16x128xf32, #tpu.memory_space<vmem>> -> memref<1x1x128xf32, #tpu.memory_space<vmem>>
        %81 = tpu.memref_squeeze %80 : memref<1x1x128xf32, #tpu.memory_space<vmem>> -> memref<1x128xf32, #tpu.memory_space<vmem>>
        %82 = tpu.memref_slice %arg12[%2] : memref<2x!tpu.dma_semaphore, #tpu.memory_space<semaphore_mem>> -> memref<1x!tpu.dma_semaphore, #tpu.memory_space<semaphore_mem>>
        %83 = tpu.memref_squeeze %82 : memref<1x!tpu.dma_semaphore, #tpu.memory_space<semaphore_mem>> -> memref<!tpu.dma_semaphore, #tpu.memory_space<semaphore_mem>>
        tpu.enqueue_dma source(%79 : memref<1x128xf32, #tpu.memory_space<any>>) target(%81 : memref<1x128xf32, #tpu.memory_space<vmem>>) target_semaphore(%83 : memref<!tpu.dma_semaphore, #tpu.memory_space<semaphore_mem>>)
        %c3_i32 = arith.constant 3 : i32
        %84 = arith.addi %56, %c3_i32 : i32
        %85 = arith.addi %52, %84 : i32
        %86 = arith.index_cast %85 : i32 to index
        %87 = memref.load %arg2[%86] : memref<16xi32, #tpu.memory_space<smem>>
        %c0_i32_38 = arith.constant 0 : i32
        %88 = tpu.memref_slice %arg3[%87, %c0_i32_38] : memref<96x128xf32, #tpu.memory_space<any>> -> memref<1x128xf32, #tpu.memory_space<any>>
        %c0_i32_39 = arith.constant 0 : i32
        %89 = tpu.memref_slice %arg11[%2, %84, %c0_i32_39] : memref<2x16x128xf32, #tpu.memory_space<vmem>> -> memref<1x1x128xf32, #tpu.memory_space<vmem>>
        %90 = tpu.memref_squeeze %89 : memref<1x1x128xf32, #tpu.memory_space<vmem>> -> memref<1x128xf32, #tpu.memory_space<vmem>>
        %91 = tpu.memref_slice %arg12[%2] : memref<2x!tpu.dma_semaphore, #tpu.memory_space<semaphore_mem>> -> memref<1x!tpu.dma_semaphore, #tpu.memory_space<semaphore_mem>>
        %92 = tpu.memref_squeeze %91 : memref<1x!tpu.dma_semaphore, #tpu.memory_space<semaphore_mem>> -> memref<!tpu.dma_semaphore, #tpu.memory_space<semaphore_mem>>
        tpu.enqueue_dma source(%88 : memref<1x128xf32, #tpu.memory_space<any>>) target(%90 : memref<1x128xf32, #tpu.memory_space<vmem>>) target_semaphore(%92 : memref<!tpu.dma_semaphore, #tpu.memory_space<semaphore_mem>>)
        %c4_i32 = arith.constant 4 : i32
        %93 = arith.addi %56, %c4_i32 : i32
        %94 = arith.addi %52, %93 : i32
        %95 = arith.index_cast %94 : i32 to index
        %96 = memref.load %arg2[%95] : memref<16xi32, #tpu.memory_space<smem>>
        %c0_i32_40 = arith.constant 0 : i32
        %97 = tpu.memref_slice %arg3[%96, %c0_i32_40] : memref<96x128xf32, #tpu.memory_space<any>> -> memref<1x128xf32, #tpu.memory_space<any>>
        %c0_i32_41 = arith.constant 0 : i32
        %98 = tpu.memref_slice %arg11[%2, %93, %c0_i32_41] : memref<2x16x128xf32, #tpu.memory_space<vmem>> -> memref<1x1x128xf32, #tpu.memory_space<vmem>>
        %99 = tpu.memref_squeeze %98 : memref<1x1x128xf32, #tpu.memory_space<vmem>> -> memref<1x128xf32, #tpu.memory_space<vmem>>
        %100 = tpu.memref_slice %arg12[%2] : memref<2x!tpu.dma_semaphore, #tpu.memory_space<semaphore_mem>> -> memref<1x!tpu.dma_semaphore, #tpu.memory_space<semaphore_mem>>
        %101 = tpu.memref_squeeze %100 : memref<1x!tpu.dma_semaphore, #tpu.memory_space<semaphore_mem>> -> memref<!tpu.dma_semaphore, #tpu.memory_space<semaphore_mem>>
        tpu.enqueue_dma source(%97 : memref<1x128xf32, #tpu.memory_space<any>>) target(%99 : memref<1x128xf32, #tpu.memory_space<vmem>>) target_semaphore(%101 : memref<!tpu.dma_semaphore, #tpu.memory_space<semaphore_mem>>)
        %c5_i32 = arith.constant 5 : i32
        %102 = arith.addi %56, %c5_i32 : i32
        %103 = arith.addi %52, %102 : i32
        %104 = arith.index_cast %103 : i32 to index
        %105 = memref.load %arg2[%104] : memref<16xi32, #tpu.memory_space<smem>>
        %c0_i32_42 = arith.constant 0 : i32
        %106 = tpu.memref_slice %arg3[%105, %c0_i32_42] : memref<96x128xf32, #tpu.memory_space<any>> -> memref<1x128xf32, #tpu.memory_space<any>>
        %c0_i32_43 = arith.constant 0 : i32
        %107 = tpu.memref_slice %arg11[%2, %102, %c0_i32_43] : memref<2x16x128xf32, #tpu.memory_space<vmem>> -> memref<1x1x128xf32, #tpu.memory_space<vmem>>
        %108 = tpu.memref_squeeze %107 : memref<1x1x128xf32, #tpu.memory_space<vmem>> -> memref<1x128xf32, #tpu.memory_space<vmem>>
        %109 = tpu.memref_slice %arg12[%2] : memref<2x!tpu.dma_semaphore, #tpu.memory_space<semaphore_mem>> -> memref<1x!tpu.dma_semaphore, #tpu.memory_space<semaphore_mem>>
        %110 = tpu.memref_squeeze %109 : memref<1x!tpu.dma_semaphore, #tpu.memory_space<semaphore_mem>> -> memref<!tpu.dma_semaphore, #tpu.memory_space<semaphore_mem>>
        tpu.enqueue_dma source(%106 : memref<1x128xf32, #tpu.memory_space<any>>) target(%108 : memref<1x128xf32, #tpu.memory_space<vmem>>) target_semaphore(%110 : memref<!tpu.dma_semaphore, #tpu.memory_space<semaphore_mem>>)
        %c6_i32 = arith.constant 6 : i32
        %111 = arith.addi %56, %c6_i32 : i32
        %112 = arith.addi %52, %111 : i32
        %113 = arith.index_cast %112 : i32 to index
        %114 = memref.load %arg2[%113] : memref<16xi32, #tpu.memory_space<smem>>
        %c0_i32_44 = arith.constant 0 : i32
        %115 = tpu.memref_slice %arg3[%114, %c0_i32_44] : memref<96x128xf32, #tpu.memory_space<any>> -> memref<1x128xf32, #tpu.memory_space<any>>
        %c0_i32_45 = arith.constant 0 : i32
        %116 = tpu.memref_slice %arg11[%2, %111, %c0_i32_45] : memref<2x16x128xf32, #tpu.memory_space<vmem>> -> memref<1x1x128xf32, #tpu.memory_space<vmem>>
        %117 = tpu.memref_squeeze %116 : memref<1x1x128xf32, #tpu.memory_space<vmem>> -> memref<1x128xf32, #tpu.memory_space<vmem>>
        %118 = tpu.memref_slice %arg12[%2] : memref<2x!tpu.dma_semaphore, #tpu.memory_space<semaphore_mem>> -> memref<1x!tpu.dma_semaphore, #tpu.memory_space<semaphore_mem>>
        %119 = tpu.memref_squeeze %118 : memref<1x!tpu.dma_semaphore, #tpu.memory_space<semaphore_mem>> -> memref<!tpu.dma_semaphore, #tpu.memory_space<semaphore_mem>>
        tpu.enqueue_dma source(%115 : memref<1x128xf32, #tpu.memory_space<any>>) target(%117 : memref<1x128xf32, #tpu.memory_space<vmem>>) target_semaphore(%119 : memref<!tpu.dma_semaphore, #tpu.memory_space<semaphore_mem>>)
        %c7_i32 = arith.constant 7 : i32
        %120 = arith.addi %56, %c7_i32 : i32
        %121 = arith.addi %52, %120 : i32
        %122 = arith.index_cast %121 : i32 to index
        %123 = memref.load %arg2[%122] : memref<16xi32, #tpu.memory_space<smem>>
        %c0_i32_46 = arith.constant 0 : i32
        %124 = tpu.memref_slice %arg3[%123, %c0_i32_46] : memref<96x128xf32, #tpu.memory_space<any>> -> memref<1x128xf32, #tpu.memory_space<any>>
        %c0_i32_47 = arith.constant 0 : i32
        %125 = tpu.memref_slice %arg11[%2, %120, %c0_i32_47] : memref<2x16x128xf32, #tpu.memory_space<vmem>> -> memref<1x1x128xf32, #tpu.memory_space<vmem>>
        %126 = tpu.memref_squeeze %125 : memref<1x1x128xf32, #tpu.memory_space<vmem>> -> memref<1x128xf32, #tpu.memory_space<vmem>>
        %127 = tpu.memref_slice %arg12[%2] : memref<2x!tpu.dma_semaphore, #tpu.memory_space<semaphore_mem>> -> memref<1x!tpu.dma_semaphore, #tpu.memory_space<semaphore_mem>>
        %128 = tpu.memref_squeeze %127 : memref<1x!tpu.dma_semaphore, #tpu.memory_space<semaphore_mem>> -> memref<!tpu.dma_semaphore, #tpu.memory_space<semaphore_mem>>
        tpu.enqueue_dma source(%124 : memref<1x128xf32, #tpu.memory_space<any>>) target(%126 : memref<1x128xf32, #tpu.memory_space<vmem>>) target_semaphore(%128 : memref<!tpu.dma_semaphore, #tpu.memory_space<semaphore_mem>>)
      }
      %c2_i32_26 = arith.constant 2 : i32
    } else {
    }
    %6 = tpu.iota {dimensions = array<i32: 1>} : vector<16x128xi32>
    %c0 = arith.constant 0 : index
    %c0_1 = arith.constant 0 : index
    %7 = vector.load %arg8[%c0, %c0_1] : memref<16x1xi32, #tpu.memory_space<vmem>>, vector<16x1xi32>
    %8 = vector.broadcast %7 : vector<16x1xi32> to vector<16x128xi32>
    %9 = arith.cmpi eq, %6, %8 : vector<16x128xi32>
    %10 = arith.extui %9 : vector<16x128xi1> to vector<16x128xi32>
    %11 = arith.sitofp %10 : vector<16x128xi32> to vector<16x128xf32>
    %c0_2 = arith.constant 0 : index
    %c0_3 = arith.constant 0 : index
    %12 = vector.load %arg4[%c0_2, %c0_3] : memref<128x128xf32, #tpu.memory_space<vmem>>, vector<128x128xf32>
    %cst = arith.constant dense<0.000000e+00> : vector<16x128xf32>
    %13 = tpu.matmul %11, %12, %cst {dimension_numbers = #tpu.dot_dimension_numbers<[1], [0], [0], [1], [0, 0, 1, 1], [], []>} : vector<16x128xf32>, vector<128x128xf32>, vector<16x128xf32> -> vector<16x128xf32>
    %c0_4 = arith.constant 0 : index
    %c0_5 = arith.constant 0 : index
    %14 = vector.load %arg5[%c0_4, %c0_5] : memref<2x128xf32, #tpu.memory_space<vmem>>, vector<1x128xf32>
    %15 = vector.broadcast %14 : vector<1x128xf32> to vector<16x128xf32>
    %16 = arith.addf %13, %15 : vector<16x128xf32>
    %c0_i32_6 = arith.constant 0 : i32
    %c0_i32_7 = arith.constant 0 : i32
    %17 = tpu.memref_slice %arg11[%2, %c0_i32_6, %c0_i32_7] : memref<2x16x128xf32, #tpu.memory_space<vmem>> -> memref<1x16x128xf32, #tpu.memory_space<vmem>>
    %18 = tpu.memref_squeeze %17 : memref<1x16x128xf32, #tpu.memory_space<vmem>> -> memref<16x128xf32, #tpu.memory_space<vmem>>
    %c0_i32_8 = arith.constant 0 : i32
    %c0_i32_9 = arith.constant 0 : i32
    %19 = tpu.memref_slice %arg11[%2, %c0_i32_8, %c0_i32_9] : memref<2x16x128xf32, #tpu.memory_space<vmem>> -> memref<1x16x128xf32, #tpu.memory_space<vmem>>
    %20 = tpu.memref_squeeze %19 : memref<1x16x128xf32, #tpu.memory_space<vmem>> -> memref<16x128xf32, #tpu.memory_space<vmem>>
    %21 = tpu.memref_slice %arg12[%2] : memref<2x!tpu.dma_semaphore, #tpu.memory_space<semaphore_mem>> -> memref<1x!tpu.dma_semaphore, #tpu.memory_space<semaphore_mem>>
    %22 = tpu.memref_squeeze %21 : memref<1x!tpu.dma_semaphore, #tpu.memory_space<semaphore_mem>> -> memref<!tpu.dma_semaphore, #tpu.memory_space<semaphore_mem>>
    tpu.wait_dma2 semaphore(%22 : memref<!tpu.dma_semaphore, #tpu.memory_space<semaphore_mem>>) src(%18 : memref<16x128xf32, #tpu.memory_space<vmem>>) dst(%20 : memref<16x128xf32, #tpu.memory_space<vmem>>)
    %23 = arith.index_cast %2 : i32 to index
    %c0_10 = arith.constant 0 : index
    %c0_11 = arith.constant 0 : index
    %24 = vector.load %arg11[%23, %c0_10, %c0_11] : memref<2x16x128xf32, #tpu.memory_space<vmem>>, vector<1x16x128xf32>
    %25 = vector.shape_cast %24 : vector<1x16x128xf32> to vector<16x128xf32>
    %26 = arith.addf %25, %16 : vector<16x128xf32>
    %cst_12 = arith.constant dense<0.000000e+00> : vector<16xf32>
    %27 = vector.multi_reduction <add>, %26, %cst_12 [1] : vector<16x128xf32> to vector<16xf32>
    %28 = vector.shape_cast %27 : vector<16xf32> to vector<16x1xf32>
    %cst_13 = arith.constant 1.280000e+02 : f32
    %29 = vector.broadcast %cst_13 : f32 to vector<16x1xf32>
    %30 = arith.divf %28, %29 : vector<16x1xf32>
    %31 = vector.broadcast %30 : vector<16x1xf32> to vector<16x128xf32>
    %32 = arith.subf %26, %31 : vector<16x128xf32>
    %33 = arith.mulf %32, %32 : vector<16x128xf32>
    %cst_14 = arith.constant dense<0.000000e+00> : vector<16xf32>
    %34 = vector.multi_reduction <add>, %33, %cst_14 [1] : vector<16x128xf32> to vector<16xf32>
    %35 = vector.shape_cast %34 : vector<16xf32> to vector<16x1xf32>
    %cst_15 = arith.constant 1.280000e+02 : f32
    %36 = vector.broadcast %cst_15 : f32 to vector<16x1xf32>
    %37 = arith.divf %35, %36 : vector<16x1xf32>
    %38 = vector.broadcast %30 : vector<16x1xf32> to vector<16x128xf32>
    %39 = arith.subf %26, %38 : vector<16x128xf32>
    %cst_16 = arith.constant 9.99999996E-13 : f32
    %40 = vector.broadcast %cst_16 : f32 to vector<16x1xf32>
    %41 = arith.addf %37, %40 : vector<16x1xf32>
    %42 = math.rsqrt %41 : vector<16x1xf32>
    %43 = vector.broadcast %42 : vector<16x1xf32> to vector<16x128xf32>
    %44 = arith.mulf %39, %43 : vector<16x128xf32>
    %c0_17 = arith.constant 0 : index
    %c0_18 = arith.constant 0 : index
    %45 = vector.load %arg6[%c0_17, %c0_18] : memref<1x128xf32, #tpu.memory_space<vmem>>, vector<1x128xf32>
    %46 = vector.broadcast %45 : vector<1x128xf32> to vector<16x128xf32>
    %47 = arith.mulf %44, %46 : vector<16x128xf32>
    %c0_19 = arith.constant 0 : index
    %c0_20 = arith.constant 0 : index
    %48 = vector.load %arg7[%c0_19, %c0_20] : memref<1x128xf32, #tpu.memory_space<vmem>>, vector<1x128xf32>
    %49 = vector.broadcast %48 : vector<1x128xf32> to vector<16x128xf32>
    %50 = arith.addf %47, %49 : vector<16x128xf32>
    %c0_21 = arith.constant 0 : index
    %c0_22 = arith.constant 0 : index
    %51 = vector.load %arg10[%c0_21, %c0_22] : memref<16x128xf32, #tpu.memory_space<vmem>>, vector<16x128xf32>
    tpu.vector_store %arg10[%c0_21, %c0_22], %50 {strides = array<i32>} : memref<16x128xf32, #tpu.memory_space<vmem>>, vector<16x128xf32>,
    return
  }
  func.func @transform_1(%arg0: i32, %arg1: i32, %arg2: memref<16xi32, #tpu.memory_space<smem>>) -> (i32, i32) {
    %c0_i32 = arith.constant 0 : i32
    %c0_i32_0 = arith.constant 0 : i32
    %c0_i32_1 = arith.constant 0 : i32
    return %c0_i32, %c0_i32_0 : i32, i32
  }
  func.func @transform_2(%arg0: i32, %arg1: i32, %arg2: memref<16xi32, #tpu.memory_space<smem>>) -> (i32, i32) {
    %c0_i32 = arith.constant 0 : i32
    %c0_i32_0 = arith.constant 0 : i32
    %c0_i32_1 = arith.constant 0 : i32
    return %c0_i32, %c0_i32_0 : i32, i32
  }
  func.func @transform_3(%arg0: i32, %arg1: i32, %arg2: memref<16xi32, #tpu.memory_space<smem>>) -> (i32, i32) {
    %c0_i32 = arith.constant 0 : i32
    %c0_i32_0 = arith.constant 0 : i32
    %c0_i32_1 = arith.constant 0 : i32
    return %c0_i32, %c0_i32_0 : i32, i32
  }
  func.func @transform_4(%arg0: i32, %arg1: i32, %arg2: memref<16xi32, #tpu.memory_space<smem>>) -> (i32, i32) {
    %c0_i32 = arith.constant 0 : i32
    %c0_i32_0 = arith.constant 0 : i32
    %c0_i32_1 = arith.constant 0 : i32
    return %c0_i32, %c0_i32_0 : i32, i32
  }
  func.func @transform_5(%arg0: i32, %arg1: i32, %arg2: memref<16xi32, #tpu.memory_space<smem>>) -> (i32, i32) {
    %c1_i32 = arith.constant 1 : i32
    %0 = arith.muli %arg0, %c1_i32 : i32
    %1 = arith.addi %0, %arg1 : i32
    %c0_i32 = arith.constant 0 : i32
    %c0_i32_0 = arith.constant 0 : i32
    return %1, %c0_i32 : i32, i32
  }
  func.func @transform_6(%arg0: i32, %arg1: i32, %arg2: memref<16xi32, #tpu.memory_space<smem>>) -> (i32, i32) {
    %c1_i32 = arith.constant 1 : i32
    %0 = arith.muli %arg0, %c1_i32 : i32
    %1 = arith.addi %0, %arg1 : i32
    %c0_i32 = arith.constant 0 : i32
    %c0_i32_0 = arith.constant 0 : i32
    return %1, %c0_i32 : i32, i32
  }
  func.func @transform_7(%arg0: i32, %arg1: i32, %arg2: memref<16xi32, #tpu.memory_space<smem>>) -> (i32, i32) {
    %c1_i32 = arith.constant 1 : i32
    %0 = arith.muli %arg0, %c1_i32 : i32
    %1 = arith.addi %0, %arg1 : i32
    %c0_i32 = arith.constant 0 : i32
    %c0_i32_0 = arith.constant 0 : i32
    return %1, %c0_i32 : i32, i32
  }
}

</mosaic_0001>

<llo_original>
// kernel: tpu_custom_call.1
$region0: #{tpu_custom_call.1}
  #allocation0 [shape = 'u32[]', space=smem, size = 0x4, offset = 0x4, fixed_abs, tag = 'smem constant byte address 0x4 - core index']
  #allocation1 [shape = 'u32[144,128]{1,0:T(1,128)}', space=vmem, size = 0x12000, scoped, tag = 'internal scratch']
  #allocation2 [shape = 'f32[2,16,128]{2,1,0:T(8,128)}', space=vmem, size = 0x4000, scoped, tag = 'scratch operand']
  #allocation3 [shape = 's32[2]{0}', space=sflag, size = 0x8, scoped, tag = 'scratch operand']
  #allocation4 [shape = 's32[1]{0}', space=sflag, size = 0x4, scoped, tag = 'scoped memory for tpu_custom_call.1']
  #allocation5 [shape = 'u8[512]{0}', space=smem, size = 0x200, scoped, tag = 'prefetched SMEM operand 0']
  #allocation10 [shape = 's32[]', space=sflag, size = 0x4, offset = 0, fixed_abs, tag = 'sflag constant byte address 0x0 - dummy sync flag']
  #allocation11 [shape = 's32[]', space=sflag, size = 0x4, offset = 0, fixed_abs, tag = 'sflag constant byte address 0x0 - dummy sync flag']
  #allocation12 [shape = 'u32[]', space=smem, size = 0x4, offset = 0x44, fixed_abs, tag = 'smem constant byte address 0x44 - assertion arg 0']
  #allocation13 [shape = 'u32[]', space=smem, size = 0x4, offset = 0x48, fixed_abs, tag = 'smem constant byte address 0x48 - assertion arg 1']
  #allocation14 [shape = 's32[]', space=sflag, size = 0x4, offset = 0, fixed_abs, tag = 'sflag constant byte address 0x0 - dummy sync flag']
  #allocation15 [shape = 's32[]', space=sflag, size = 0x4, offset = 0, fixed_abs, tag = 'sflag constant byte address 0x0 - dummy sync flag']
  #allocation16 [shape = 's32[]', space=sflag, size = 0x4, offset = 0, fixed_abs, tag = 'sflag constant byte address 0x0 - dummy sync flag']
  #allocation17 [shape = 's32[]', space=sflag, size = 0x4, offset = 0, fixed_abs, tag = 'sflag constant byte address 0x0 - dummy sync flag']
  #allocation18 [shape = 's32[]', space=sflag, size = 0x4, offset = 0, fixed_abs, tag = 'sflag constant byte address 0x0 - dummy sync flag']
  #allocation19 [shape = 's32[]', space=sflag, size = 0x4, offset = 0, fixed_abs, tag = 'sflag constant byte address 0x0 - dummy sync flag']
  #allocation20 [shape = 's32[]', space=sflag, size = 0x4, offset = 0, fixed_abs, tag = 'sflag constant byte address 0x0 - dummy sync flag']
  #allocation21 [shape = 's32[]', space=sflag, size = 0x4, offset = 0, fixed_abs, tag = 'sflag constant byte address 0x0 - dummy sync flag']
  #allocation22 [shape = 's32[]', space=sflag, size = 0x4, offset = 0, fixed_abs, tag = 'sflag constant byte address 0x0 - dummy sync flag']
  #allocation23 [shape = 's32[]', space=sflag, size = 0x4, offset = 0, fixed_abs, tag = 'sflag constant byte address 0x0 - dummy sync flag']
  #allocation24 [shape = 's32[]', space=sflag, size = 0x4, offset = 0, fixed_abs, tag = 'sflag constant byte address 0x0 - dummy sync flag']
  #allocation25 [shape = 's32[]', space=sflag, size = 0x4, offset = 0, fixed_abs, tag = 'sflag constant byte address 0x0 - dummy sync flag']
  #allocation26 [shape = 's32[]', space=sflag, size = 0x4, offset = 0, fixed_abs, tag = 'sflag constant byte address 0x0 - dummy sync flag']
  #allocation27 [shape = 's32[]', space=sflag, size = 0x4, offset = 0, fixed_abs, tag = 'sflag constant byte address 0x0 - dummy sync flag']
  %s0 = inlined_call_operand.vmem [shape: s32[16], index: 0, kind: input, shape index: {}]
  %s1 = inlined_call_operand.hbm [shape: f32[96,128], index: 1, kind: input, shape index: {}]
  %s2 = inlined_call_operand.hbm [shape: f32[128,128], index: 2, kind: input, shape index: {}]
  %s3 = inlined_call_operand.vmem [shape: f32[2,128], index: 3, kind: input, shape index: {}]
  %s4 = inlined_call_operand.vmem [shape: f32[1,128], index: 4, kind: input, shape index: {}]
  %s5 = inlined_call_operand.vmem [shape: f32[1,128], index: 5, kind: input, shape index: {}]
  %s6 = inlined_call_operand.vmem [shape: s32[16,1], index: 6, kind: input, shape index: {}]
  %s7 = inlined_call_operand.vmem [shape: s32[16,1], index: 7, kind: input, shape index: {}]
  %s8 = inlined_call_operand.hbm [shape: f32[16,128], index: 8, kind: output, shape index: {}]
  %s9 = sld [smem:[#allocation0]]
  $region81: #{tpu_custom_call.1} parent=0
    _
  %s11 = ssub.s32 1, %s9
  %s12 = scalar_select 0, %s11, %s9
  %s13 = sshll.u32 %s0, 4
  %s14 = int_to_ptr.vmem [resolvable:$true] %s13
  %16 = dma.vmem_to_smem %s14, 16, [#allocation5], [#allocation4]
  %17 = dma.done [#allocation4], 16
  %18 = sfence
  $region1: #{tpu_custom_call.1} parent=0
    #allocation6 [shape = 'u8[65536]{0}', space=vmem, size = 0x10000, scoped, tag = 'input window, operand 2, single buffered']
    #allocation7 [shape = 's32[1]{0}', space=sflag, size = 0x4, scoped, tag = 'scoped memory for tpu_custom_call.1']
    #allocation8 [shape = 's32[1]{0}', space=sflag, size = 0x4, scoped, tag = 'scoped memory for tpu_custom_call.1']
    #allocation9 [shape = 'u8[8192]{0}', space=vmem, size = 0x2000, scoped, tag = 'output window, operand 0, single buffered']
    %19 = vsyncpa [#allocation7], 0
    %20 = vsyncpa [#allocation8], 0
    // Predicated region
    $region2: #{tpu_custom_call.1} parent=1 // pred_check
      _
    $region3: #{tpu_custom_call.1} parent=1 // pred_check_branch
      %22 = sbr.rel (0) target = $region5
    $region4: #{tpu_custom_call.1} parent=1 // pred_region
      %s24 = ssub.s32 2048, 2048
      %25 = vsyncadd [#allocation7], %s24
      %s26 = sshll.u32 [#allocation6], 4
      %s27 = int_to_ptr.vmem [resolvable:$true] %s26
      %32 = dma.hbm_to_vmem [thread:$0]  %s2, 2048, %s27, [#allocation7], 128, 128, 8
    $region5: #{tpu_custom_call.1} parent=1 // pred_fallthru
      _
    // Predicated region
    $region6: #{tpu_custom_call.1} parent=1 // pred_check
      _
    $region7: #{tpu_custom_call.1} parent=1 // pred_check_branch
      %34 = sbr.rel (0) target = $region9
    $region8: #{tpu_custom_call.1} parent=1 // pred_region
      _
    $region9: #{tpu_custom_call.1} parent=1 // pred_fallthru
      _
    // Predicated region
    $region10: #{tpu_custom_call.1} parent=1 // pred_check
      _
    $region11: #{tpu_custom_call.1} parent=1 // pred_check_branch
      %36 = sbr.rel (0) target = $region13
    $region12: #{tpu_custom_call.1} parent=1 // pred_region
      _
    $region13: #{tpu_custom_call.1} parent=1 // pred_fallthru
      _
    // Predicated region
    $region14: #{tpu_custom_call.1} parent=1 // pred_check
      _
    $region15: #{tpu_custom_call.1} parent=1 // pred_check_branch
      %38 = sbr.rel (0) target = $region17
    $region16: #{tpu_custom_call.1} parent=1 // pred_region
      _
    $region17: #{tpu_custom_call.1} parent=1 // pred_fallthru
      _
    // Predicated region
    $region18: #{tpu_custom_call.1} parent=1 // pred_check
      _
    $region19: #{tpu_custom_call.1} parent=1 // pred_check_branch
      %40 = sbr.rel (0) target = $region21
    $region20: #{tpu_custom_call.1} parent=1 // pred_region
      %s41 = sadd.s32 0, 0
      %s42 = smul.u32 2, %s41
      %p43 = scmp.lt.s32.totalorder %s42, 1
      %s44 = scalar_select %p43, %s42, 1
      %s45 = smul.addr %s44, 8
      %s46 = scalar_lea.vmem %s6, %s45
      %s47 = sadd.s32 0, 0
      %s48 = smul.u32 2, %s47
    $region21: #{tpu_custom_call.1} parent=1 // pred_fallthru
      _
    // Predicated region
    $region22: #{tpu_custom_call.1} parent=1 // pred_check
      _
    $region23: #{tpu_custom_call.1} parent=1 // pred_check_branch
      %50 = sbr.rel (0) target = $region25
    $region24: #{tpu_custom_call.1} parent=1 // pred_region
      %s51 = sadd.s32 0, 0
      %s52 = smul.u32 2, %s51
      %p53 = scmp.lt.s32.totalorder %s52, 1
      %s54 = scalar_select %p53, %s52, 1
      %s55 = smul.addr %s54, 8
      %s56 = scalar_lea.vmem %s7, %s55
      %s57 = sadd.s32 0, 0
      %s58 = smul.u32 2, %s57
    $region25: #{tpu_custom_call.1} parent=1 // pred_fallthru
      _
    // Predicated region
    $region26: #{tpu_custom_call.1} parent=1 // pred_check
      _
    $region27: #{tpu_custom_call.1} parent=1 // pred_check_branch
      %60 = sbr.rel (0) target = $region29
    $region28: #{tpu_custom_call.1} parent=1 // pred_region
      %61 = dma.done [#allocation7], 2048
    $region29: #{tpu_custom_call.1} parent=1 // pred_fallthru
      _
    %s62 = sadd.s32 0, 0
    %s63 = smul.u32 2, %s62
    %p64 = scmp.lt.s32.totalorder %s63, 1
    %s65 = scalar_select %p64, %s63, 1
    %s66 = smul.addr %s65, 8
    %s67 = scalar_lea.vmem %s6, %s66
    %s68 = sadd.s32 0, 0
    %s69 = smul.u32 2, %s68
    %p70 = scmp.lt.s32.totalorder %s69, 1
    %s71 = scalar_select %p70, %s69, 1
    %s72 = smul.addr %s71, 8
    %s73 = scalar_lea.vmem %s7, %s72
    %s74 = sadd.s32 0, 0
    %s75 = smul.u32 2, %s74
    %p76 = scmp.lt.s32.totalorder %s75, 1
    %s77 = scalar_select %p76, %s75, 1
    %s78 = smul.addr %s77, 8
    %s79 = scalar_lea.vmem %s6, %s78
    %s80 = sadd.s32 0, 0
    %s81 = smul.u32 2, %s80
    %s82 = sadd.s32 0, 0
    %s83 = smul.u32 2, %s82
    %p84 = scmp.lt.s32.totalorder %s83, 1
    %s85 = scalar_select %p84, %s83, 1
    %s86 = smul.addr %s85, 8
    %s87 = scalar_lea.vmem %s7, %s86
    %s88 = sadd.s32 0, 0
    %s89 = smul.u32 2, %s88
    %s90 = sadd.s32 0, 0
    %s91 = smul.u32 2, %s90
    %s92 = sadd.s32 0, 0
    %p93 = scmp.lt.s32.totalorder %s92, 0
    %s94 = ssub.s32 0, %s92
    %s95 = scalar_select %p93, %s94, %s92
    %s96 = sand.u32 %s95, 1
    %s97 = ssub.s32 0, %s96
    %s98 = scalar_select %p93, %s97, %s96
    %p99 = scmp.eq.s32.totalorder 0, 0
    // Predicated region
    $region30: #{tpu_custom_call.1} parent=1 // pred_check
      %p100 = pneg %p99
    $region31: #{tpu_custom_call.1} parent=1 // pred_check_branch
      %102 = sbr.rel (%p100) target = $region33
    $region32: #{tpu_custom_call.1} parent=1 // pred_region
      %s103 = smul.u32 %s92, 16
      loop: start=0, step=1, limit=2
      $region34: #{tpu_custom_call.1} parent=32 // loop_pre_header
        _
      $region35: #{tpu_custom_call.1} parent=32 // loop_header
        %s105 = sphi 0, %s109
        %p106 = scmp.ge.s32.totalorder %s105, 2
      $region36: #{tpu_custom_call.1} parent=32 // loop_header_branch
        %108 = sbr.rel (%p106) target = $region40
      $region37: #{tpu_custom_call.1} parent=32 // loop_body
        %s110 = smul.u32 %s105, 8
        %s111 = sadd.s32 %s103, %s110
        %s112 = sld [smem:[#allocation5 + %s111]]
        %s113 = smul.addr %s112, 16
        %s114 = scalar_lea.hbm %s1, %s113
        %s115 = smul.u32 %s98, 16
        %s116 = sadd.s32 %s110, %s115
        %s117 = scalar_lea.vmem [#allocation2], %s116
        %s118 = scalar_lea.sflag [#allocation3], %s98
        // Predicated region
        $region41: #{tpu_custom_call.1} parent=37 // pred_check
          _
        $region42: #{tpu_custom_call.1} parent=37 // pred_check_branch
          %120 = sbr.rel target = $region44
        $region43: #{tpu_custom_call.1} parent=37 // pred_region
          %121 = sst [smem:[#allocation12]] [#allocation11]
          %122 = sst [smem:[#allocation13]] [#allocation10]
        $region44: #{tpu_custom_call.1} parent=37 // pred_fallthru
          _
        %124 = shalt.err (0)
        %s126 = sshll.u32 %s117, 4
        %s127 = int_to_ptr.vmem [resolvable:$true] %s126
        %129 = dma.hbm_to_vmem [thread:$0]  %s114, 16, %s127, %s118
        %s130 = sadd.s32 %s110, 1
        %s131 = sadd.s32 %s103, %s130
        %s132 = sld [smem:[#allocation5 + %s131]]
        %s133 = smul.addr %s132, 16
        %s134 = scalar_lea.hbm %s1, %s133
        %s135 = sadd.s32 %s130, %s115
        %s136 = scalar_lea.vmem [#allocation2], %s135
        // Predicated region
        $region45: #{tpu_custom_call.1} parent=37 // pred_check
          _
        $region46: #{tpu_custom_call.1} parent=37 // pred_check_branch
          %138 = sbr.rel target = $region48
        $region47: #{tpu_custom_call.1} parent=37 // pred_region
          %139 = sst [smem:[#allocation12]] [#allocation15]
          %140 = sst [smem:[#allocation13]] [#allocation14]
        $region48: #{tpu_custom_call.1} parent=37 // pred_fallthru
          _
        %142 = shalt.err (0)
        %s144 = sshll.u32 %s136, 4
        %s145 = int_to_ptr.vmem [resolvable:$true] %s144
        %147 = dma.hbm_to_vmem [thread:$0]  %s134, 16, %s145, %s118
        %s148 = sadd.s32 %s110, 2
        %s149 = sadd.s32 %s103, %s148
        %s150 = sld [smem:[#allocation5 + %s149]]
        %s151 = smul.addr %s150, 16
        %s152 = scalar_lea.hbm %s1, %s151
        %s153 = sadd.s32 %s148, %s115
        %s154 = scalar_lea.vmem [#allocation2], %s153
        // Predicated region
        $region49: #{tpu_custom_call.1} parent=37 // pred_check
          _
        $region50: #{tpu_custom_call.1} parent=37 // pred_check_branch
          %156 = sbr.rel target = $region52
        $region51: #{tpu_custom_call.1} parent=37 // pred_region
          %157 = sst [smem:[#allocation12]] [#allocation17]
          %158 = sst [smem:[#allocation13]] [#allocation16]
        $region52: #{tpu_custom_call.1} parent=37 // pred_fallthru
          _
        %160 = shalt.err (0)
        %s162 = sshll.u32 %s154, 4
        %s163 = int_to_ptr.vmem [resolvable:$true] %s162
        %165 = dma.hbm_to_vmem [thread:$0]  %s152, 16, %s163, %s118
        %s166 = sadd.s32 %s110, 3
        %s167 = sadd.s32 %s103, %s166
        %s168 = sld [smem:[#allocation5 + %s167]]
        %s169 = smul.addr %s168, 16
        %s170 = scalar_lea.hbm %s1, %s169
        %s171 = sadd.s32 %s166, %s115
        %s172 = scalar_lea.vmem [#allocation2], %s171
        // Predicated region
        $region53: #{tpu_custom_call.1} parent=37 // pred_check
          _
        $region54: #{tpu_custom_call.1} parent=37 // pred_check_branch
          %174 = sbr.rel target = $region56
        $region55: #{tpu_custom_call.1} parent=37 // pred_region
          %175 = sst [smem:[#allocation12]] [#allocation19]
          %176 = sst [smem:[#allocation13]] [#allocation18]
        $region56: #{tpu_custom_call.1} parent=37 // pred_fallthru
          _
        %178 = shalt.err (0)
        %s180 = sshll.u32 %s172, 4
        %s181 = int_to_ptr.vmem [resolvable:$true] %s180
        %183 = dma.hbm_to_vmem [thread:$0]  %s170, 16, %s181, %s118
        %s184 = sadd.s32 %s110, 4
        %s185 = sadd.s32 %s103, %s184
        %s186 = sld [smem:[#allocation5 + %s185]]
        %s187 = smul.addr %s186, 16
        %s188 = scalar_lea.hbm %s1, %s187
        %s189 = sadd.s32 %s184, %s115
        %s190 = scalar_lea.vmem [#allocation2], %s189
        // Predicated region
        $region57: #{tpu_custom_call.1} parent=37 // pred_check
          _
        $region58: #{tpu_custom_call.1} parent=37 // pred_check_branch
          %192 = sbr.rel target = $region60
        $region59: #{tpu_custom_call.1} parent=37 // pred_region
          %193 = sst [smem:[#allocation12]] [#allocation21]
          %194 = sst [smem:[#allocation13]] [#allocation20]
        $region60: #{tpu_custom_call.1} parent=37 // pred_fallthru
          _
        %196 = shalt.err (0)
        %s198 = sshll.u32 %s190, 4
        %s199 = int_to_ptr.vmem [resolvable:$true] %s198
        %201 = dma.hbm_to_vmem [thread:$0]  %s188, 16, %s199, %s118
        %s202 = sadd.s32 %s110, 5
        %s203 = sadd.s32 %s103, %s202
        %s204 = sld [smem:[#allocation5 + %s203]]
        %s205 = smul.addr %s204, 16
        %s206 = scalar_lea.hbm %s1, %s205
        %s207 = sadd.s32 %s202, %s115
        %s208 = scalar_lea.vmem [#allocation2], %s207
        // Predicated region
        $region61: #{tpu_custom_call.1} parent=37 // pred_check
          _
        $region62: #{tpu_custom_call.1} parent=37 // pred_check_branch
          %210 = sbr.rel target = $region64
        $region63: #{tpu_custom_call.1} parent=37 // pred_region
          %211 = sst [smem:[#allocation12]] [#allocation23]
          %212 = sst [smem:[#allocation13]] [#allocation22]
        $region64: #{tpu_custom_call.1} parent=37 // pred_fallthru
          _
        %214 = shalt.err (0)
        %s216 = sshll.u32 %s208, 4
        %s217 = int_to_ptr.vmem [resolvable:$true] %s216
        %219 = dma.hbm_to_vmem [thread:$0]  %s206, 16, %s217, %s118
        %s220 = sadd.s32 %s110, 6
        %s221 = sadd.s32 %s103, %s220
        %s222 = sld [smem:[#allocation5 + %s221]]
        %s223 = smul.addr %s222, 16
        %s224 = scalar_lea.hbm %s1, %s223
        %s225 = sadd.s32 %s220, %s115
        %s226 = scalar_lea.vmem [#allocation2], %s225
        // Predicated region
        $region65: #{tpu_custom_call.1} parent=37 // pred_check
          _
        $region66: #{tpu_custom_call.1} parent=37 // pred_check_branch
          %228 = sbr.rel target = $region68
        $region67: #{tpu_custom_call.1} parent=37 // pred_region
          %229 = sst [smem:[#allocation12]] [#allocation25]
          %230 = sst [smem:[#allocation13]] [#allocation24]
        $region68: #{tpu_custom_call.1} parent=37 // pred_fallthru
          _
        %232 = shalt.err (0)
        %s234 = sshll.u32 %s226, 4
        %s235 = int_to_ptr.vmem [resolvable:$true] %s234
        %237 = dma.hbm_to_vmem [thread:$0]  %s224, 16, %s235, %s118
        %s238 = sadd.s32 %s110, 7
        %s239 = sadd.s32 %s103, %s238
        %s240 = sld [smem:[#allocation5 + %s239]]
        %s241 = smul.addr %s240, 16
        %s242 = scalar_lea.hbm %s1, %s241
        %s243 = sadd.s32 %s238, %s115
        %s244 = scalar_lea.vmem [#allocation2], %s243
        // Predicated region
        $region69: #{tpu_custom_call.1} parent=37 // pred_check
          _
        $region70: #{tpu_custom_call.1} parent=37 // pred_check_branch
          %246 = sbr.rel target = $region72
        $region71: #{tpu_custom_call.1} parent=37 // pred_region
          %247 = sst [smem:[#allocation12]] [#allocation27]
          %248 = sst [smem:[#allocation13]] [#allocation26]
        $region72: #{tpu_custom_call.1} parent=37 // pred_fallthru
          _
        %250 = shalt.err (0)
        %s252 = sshll.u32 %s244, 4
        %s253 = int_to_ptr.vmem [resolvable:$true] %s252
        %255 = dma.hbm_to_vmem [thread:$0]  %s242, 16, %s253, %s118
      $region38: #{tpu_custom_call.1} parent=32 // loop_footer
        %s109 = sadd.s32 1, %s105
      $region39: #{tpu_custom_call.1} parent=32 // loop_footer_branch
        %104 = sbr.rel target = $region35
      $region40: #{tpu_custom_call.1} parent=32 // loop_exit
        _
    $region33: #{tpu_custom_call.1} parent=1 // pred_fallthru
      _
    %v256 = vlaneseq
    %v257 = vand.u32 %v256, 127
    %v258 = vld [vmem:[%s79] sm:$0xff]
    %v259 = vld [vmem:[%s79 + $0x8] sm:$0xff]
    %260 = vset.pattern.permute.xlu0 0
    %261 = vperm.xlu0 %260, %v258
    %v262 = vpop.permute.xlu0 %261
    %263 = vset.pattern.permute.xlu0 0
    %264 = vperm.xlu0 %263, %v259
    %v265 = vpop.permute.xlu0 %264
    %vm266 = vcmp.eq.s32.totalorder %v257, %v262
    %vm267 = vcmp.eq.s32.totalorder %v257, %v265
    %v268 = vsel %vm266, 1, 0
    %v269 = vsel %vm267, 1, 0
    %v270 = vcvt.s32.f32 %v268
    %v271 = vcvt.s32.f32 %v269
    %v272 = vld [vmem:[#allocation6] sm:$0xff]
    %v273 = vld [vmem:[#allocation6 + $0x8] sm:$0xff]
    %v274 = vld [vmem:[#allocation6 + $0x10] sm:$0xff]
    %v275 = vld [vmem:[#allocation6 + $0x18] sm:$0xff]
    %v276 = vld [vmem:[#allocation6 + $0x20] sm:$0xff]
    %v277 = vld [vmem:[#allocation6 + $0x28] sm:$0xff]
    %v278 = vld [vmem:[#allocation6 + $0x30] sm:$0xff]
    %v279 = vld [vmem:[#allocation6 + $0x38] sm:$0xff]
    %v280 = vld [vmem:[#allocation6 + $0x40] sm:$0xff]
    %v281 = vld [vmem:[#allocation6 + $0x48] sm:$0xff]
    %v282 = vld [vmem:[#allocation6 + $0x50] sm:$0xff]
    %v283 = vld [vmem:[#allocation6 + $0x58] sm:$0xff]
    %v284 = vld [vmem:[#allocation6 + $0x60] sm:$0xff]
    %v285 = vld [vmem:[#allocation6 + $0x68] sm:$0xff]
    %v286 = vld [vmem:[#allocation6 + $0x70] sm:$0xff]
    %v287 = vld [vmem:[#allocation6 + $0x78] sm:$0xff]
    %v288 = vld [vmem:[%s3] sm:$0x1]
    %v289 = vlaneseq
    %v290 = vshrl.u32 %v289, 7
    %v291 = vsub.s32 0, %v290
    %v292 = vrot.slane %v288, %v291
    %293 = vmatprep.subr.mxu0 0.0
    %294 = vmatpush1.msra.mxu0 %v272
    %295 = vmatprep.subr.mxu0 0.0
    %296 = vmatpush1.msra.mxu0 %v273
    %297 = vmatprep.subr.mxu0 0.0
    %298 = vmatpush1.msra.mxu0 %v274
    %299 = vmatprep.subr.mxu0 0.0
    %300 = vmatpush1.msra.mxu0 %v275
    %301 = vmatprep.subr.mxu0 0.0
    %302 = vmatpush1.msra.mxu0 %v276
    %303 = vmatprep.subr.mxu0 0.0
    %304 = vmatpush1.msra.mxu0 %v277
    %305 = vmatprep.subr.mxu0 0.0
    %306 = vmatpush1.msra.mxu0 %v278
    %307 = vmatprep.subr.mxu0 0.0
    %308 = vmatpush1.msra.mxu0 %v279
    %309 = vmatprep.subr.mxu0 0.0
    %310 = vmatpush1.msra.mxu0 %v280
    %311 = vmatprep.subr.mxu0 0.0
    %312 = vmatpush1.msra.mxu0 %v281
    %313 = vmatprep.subr.mxu0 0.0
    %314 = vmatpush1.msra.mxu0 %v282
    %315 = vmatprep.subr.mxu0 0.0
    %316 = vmatpush1.msra.mxu0 %v283
    %317 = vmatprep.subr.mxu0 0.0
    %318 = vmatpush1.msra.mxu0 %v284
    %319 = vmatprep.subr.mxu0 0.0
    %320 = vmatpush1.msra.mxu0 %v285
    %321 = vmatprep.subr.mxu0 0.0
    %322 = vmatpush1.msra.mxu0 %v286
    %323 = vmatprep.subr.mxu0 0.0
    %324 = vmatpush1.msra.mxu0 %v287
    %325 = vmatprep.subr.mxu0 0.0
    %326 = vmatpush1.msra.mxu0 0.0
    %327 = vmatprep.subr.mxu0 0.0
    %328 = vmatpush1.msra.mxu0 0.0
    %329 = vmatprep.subr.mxu0 0.0
    %330 = vmatpush1.msra.mxu0 0.0
    %331 = vmatprep.subr.mxu0 0.0
    %332 = vmatpush1.msra.mxu0 0.0
    %333 = vmatprep.subr.mxu0 0.0
    %334 = vmatpush1.msra.mxu0 0.0
    %335 = vmatprep.subr.mxu0 0.0
    %336 = vmatpush1.msra.mxu0 0.0
    %337 = vmatprep.subr.mxu0 0.0
    %338 = vmatpush1.msra.mxu0 0.0
    %339 = vmatprep.subr.mxu0 0.0
    %340 = vmatpush1.msra.mxu0 0.0
    %341 = vmatprep.subr.mxu0 0.0
    %342 = vmatpush1.msra.mxu0 0.0
    %343 = vmatprep.subr.mxu0 0.0
    %344 = vmatpush1.msra.mxu0 0.0
    %345 = vmatprep.subr.mxu0 0.0
    %346 = vmatpush1.msra.mxu0 0.0
    %347 = vmatprep.subr.mxu0 0.0
    %348 = vmatpush1.msra.mxu0 0.0
    %349 = vmatprep.subr.mxu0 0.0
    %350 = vmatpush1.msra.mxu0 0.0
    %351 = vmatprep.subr.mxu0 0.0
    %352 = vmatpush1.msra.mxu0 0.0
    %353 = vmatprep.subr.mxu0 0.0
    %354 = vmatpush1.msra.mxu0 0.0
    %355 = vmatprep.subr.mxu0 0.0
    %356 = vmatpush1.msra.mxu0 0.0
    %357 = vmatprep.mubr.f32.mxu0 0.0
    %358 = vmatmul.mubr.f32.gmra.mrb[0].mxu0 %v270
    %v359 = vpop.f32.mrb[0].mxu0
    %v360 = vadd.f32 %v292, %v359
    %v361 = vpop.f32.mrb[0].mxu0
    %362 = vmatprep.mubr.f32.mxu0 0.0
    %363 = vmatmul.mubr.f32.gmra.mrb[0].mxu0 %v271
    %v364 = vpop.f32.mrb[0].mxu0
    %v365 = vadd.f32 %v292, %v364
    %v366 = vpop.f32.mrb[0].mxu0
    %367 = vdwg.mxu0
    %s368 = smul.u32 %s98, 16
    %s369 = scalar_lea.vmem [#allocation2], %s368
    %s370 = scalar_lea.sflag [#allocation3], %s98
    %s371 = smul.u32 16, 1
    %s372 = sshll.u32 %s371, 4
    %373 = dma.done %s370, %s372
    %v374 = vld [vmem:[%s369] sm:$0xff]
    %v375 = vld [vmem:[%s369 + $0x8] sm:$0xff]
    %v376 = vadd.f32 %v374, %v360
    %v377 = vadd.f32 %v375, %v365
    %378 = vadd.xlane.f32.xlu0 %v376
    %v379 = vpop.xlane.xlu0 %378
    %380 = vadd.xlane.f32.xlu0 %v377
    %v381 = vpop.xlane.xlu0 %380
    %v382 = vrcp.pop 128.0
    %v383 = vmul.f32 %v379, %v382
    %v384 = vmul.f32 %v381, %v382
    %v385 = vsub.f32 %v376, %v383
    %v386 = vsub.f32 %v377, %v384
    %v387 = vmul.f32 %v385, %v385
    %v388 = vmul.f32 %v386, %v386
    %389 = vadd.xlane.f32.xlu0 %v387
    %v390 = vpop.xlane.xlu0 %389
    %391 = vadd.xlane.f32.xlu0 %v388
    %v392 = vpop.xlane.xlu0 %391
    %v393 = vmul.f32 %v390, %v382
    %v394 = vmul.f32 %v392, %v382
    %v395 = vadd.f32 %v393, 1e-12
    %v396 = vadd.f32 %v394, 1e-12
    %v397 = vrsqrt.pop %v395
    %v398 = vrsqrt.pop %v396
    %v399 = vmul.f32 %v385, %v397
    %v400 = vmul.f32 %v386, %v398
    %v401 = vld [vmem:[%s4] sm:$0x1]
    %v403 = vlaneseq
    %v404 = vshrl.u32 %v403, 7
    %v405 = vsub.s32 0, %v404
    %v406 = vrot.slane %v401, %v405
    %v408 = vmul.f32 %v399, %v406
    %v409 = vmul.f32 %v400, %v406
    %v410 = vld [vmem:[%s5] sm:$0x1]
    %v412 = vlaneseq
    %v413 = vshrl.u32 %v412, 7
    %v414 = vsub.s32 0, %v413
    %v415 = vrot.slane %v410, %v414
    %v417 = vadd.f32 %v408, %v415
    %v418 = vadd.f32 %v409, %v415
    %419 = vst [vmem:[#allocation9] sm:$0xff] %v417
    %420 = vst [vmem:[#allocation9 + $0x8] sm:$0xff] %v418
    // Predicated region
    $region73: #{tpu_custom_call.1} parent=1 // pred_check
      _
    $region74: #{tpu_custom_call.1} parent=1 // pred_check_branch
      %422 = sbr.rel (0) target = $region76
    $region75: #{tpu_custom_call.1} parent=1 // pred_region
      %s423 = sadd.s32 0, 0
      %s424 = smul.u32 2, %s423
      %s426 = ssub.s32 256, 256
      %427 = vsyncadd [#allocation8], %s426
      %s428 = smul.addr %s424, 128
      %s429 = scalar_lea.hbm %s8, %s428
      %s430 = sshll.u32 [#allocation9], 4
      %s431 = int_to_ptr.vmem [resolvable:$true] %s430
      %436 = dma.vmem_to_hbm [thread:$0]  %s431, 256, %s429, [#allocation8], 128, 128, 8
    $region76: #{tpu_custom_call.1} parent=1 // pred_fallthru
      _
    // Predicated region
    $region77: #{tpu_custom_call.1} parent=1 // pred_check
      _
    $region78: #{tpu_custom_call.1} parent=1 // pred_check_branch
      %438 = sbr.rel (0) target = $region80
    $region79: #{tpu_custom_call.1} parent=1 // pred_region
      %439 = dma.done [#allocation8], 256
    $region80: #{tpu_custom_call.1} parent=1 // pred_fallthru
      _
    %440 = vsyncpa [#allocation7], 1
    %441 = vsyncpa [#allocation8], 1
  %442 = vsyncmov [#allocation3]
  %s443 = vpop.sfrf %442
  %p444 = scmp.eq.s32.totalorder %s443, 0
  %p445 = pneg %p444
  %447 = shalt.err (%p445)
  %s448 = scalar_lea.sflag [#allocation3], 1
  %449 = vsyncmov %s448
  %s450 = vpop.sfrf %449
  %p451 = scmp.eq.s32.totalorder %s450, 0
  %p452 = pneg %p451
  %454 = shalt.err (%p452)

</llo_original>
